<compile_context>
chip_gen: v6e
topology: v6e:2x2x1
jax: 0.10.0
libtpu: 0.0.40
codegen_flags: <defaults>
</compile_context>

<pallas_src>
import functools

import jax
import jax.numpy as jnp
from jax import lax
from jax.experimental import pallas as pl
from jax.experimental.pallas import tpu as pltpu


_SUB = 8                     # sublane granularity (f32 vreg rows)
_MAX_LANE_BLK = 16 * 1024    # lane-tiling width cap (multiple of 128)


def _cdiv(a, b):
    return (a + b - 1) // b


def _chip_config():
    """Per-generation tiling / compiler knobs (conservative defaults)."""
    kind = ""
    try:
        kind = jax.devices()[0].device_kind.lower()
    except Exception:
        pass
    if "7x" in kind or "v7" in kind:
        # v7x: 2 TensorCores/chip, 64 MiB physical VMEM, ~3.2 TB/s HBM.
        return dict(ncores=2, core_parallel=True,
                    target_block_bytes=6 * 1024 * 1024,
                    vmem_limit=44 * 1024 * 1024)
    if "v6" in kind or "v5" in kind:
        # v5e / v6e: single TensorCore, 128 MiB physical VMEM.
        return dict(ncores=1, core_parallel=False,
                    target_block_bytes=2 * 1024 * 1024,
                    vmem_limit=64 * 1024 * 1024)
    return dict(ncores=1, core_parallel=False,
                target_block_bytes=2 * 1024 * 1024,
                vmem_limit=None)


# --------------------------------------------------------------------------
# Masked reconstruction SSE kernel
# --------------------------------------------------------------------------
def _masked_sse(xr2, x2, mask2, bc, hw, cfg):
    """sum over valid (row, col) of ((nan0(xr) - nan0(x)) * mask)^2 in f32."""
    itemsize = jnp.dtype(xr2.dtype).itemsize

    # Lane (column) tiling.  Full H*W when it fits (full-dim blocks are exempt
    # from the 128-lane divisibility rule), else fixed 16K-lane blocks.
    lane_blk = hw if hw <= _MAX_LANE_BLK else _MAX_LANE_BLK
    jc_n = _cdiv(hw, lane_blk)

    # Row tiling: ~target_block_bytes per input block, multiple of 8 rows.
    ncores = cfg["ncores"]
    row_bytes = lane_blk * itemsize
    cap = max(_SUB, (cfg["target_block_bytes"] // row_bytes) // _SUB * _SUB)
    if bc < _SUB:
        tbc = bc                       # full-dim block (exempt from 8-row rule)
    else:
        tbc = min(cap, (bc // _SUB) * _SUB)
    nb = _cdiv(bc, tbc)                # total row blocks
    jr_n = _cdiv(nb, ncores)           # row blocks iterated per core

    chunk = min(_SUB, tbc)             # rows per inner-loop step
    n_chunks = tbc // chunk
    unroll = n_chunks <= 8

    def kernel(xr_ref, x_ref, m_ref, out_ref, acc_ref):
        p = pl.program_id(0)
        jc = pl.program_id(1)
        jr = pl.program_id(2)

        @pl.when(jnp.logical_and(jc == 0, jr == 0))
        def _():
            acc_ref[...] = jnp.zeros_like(acc_ref)

        # Column validity + mask cleanup, hoisted out of the chunk loop.
        col_ids = jc * lane_blk + lax.broadcasted_iota(
            jnp.int32, (1, lane_blk), 1)
        col_ok = col_ids < hw
        m_eff = jnp.where(col_ok, m_ref[...].astype(jnp.float32), 0.0)

        # Unclamped row offset of this block (fully out-of-range blocks on the
        # second core simply contribute zero through the validity select).
        row0 = (p * jr_n + jr) * tbc

        def chunk_body(c, carry):
            r = pl.multiple_of(c * chunk, chunk)
            xr = xr_ref[pl.ds(r, chunk), :]
            xx = x_ref[pl.ds(r, chunk), :]
            # NaN cleaning + subtraction stay in the input dtype (bf16 inputs
            # keep this stage in bf16); only the masked diff is f32.
            xr_c = jnp.where(jnp.isnan(xr), jnp.zeros_like(xr), xr)
            x_c = jnp.where(jnp.isnan(xx), jnp.zeros_like(xx), xx)
            diff = xr_c - x_c
            dm = diff.astype(jnp.float32) * m_eff   # == xr*m - x*m (torch order)
            err = dm * dm
            # Ragged row / lane tails: out-of-bounds VMEM block contents are
            # garbage (possibly Inf/NaN); the select forces them to zero.
            row_ids = row0 + c * chunk + lax.broadcasted_iota(
                jnp.int32, (chunk, 1), 0)
            valid = jnp.logical_and(row_ids < bc, col_ok)
            acc_ref[...] += jnp.where(valid, err, 0.0)
            return carry

        lax.fori_loop(0, n_chunks, chunk_body, 0, unroll=unroll)

        @pl.when(jnp.logical_and(jc == pl.num_programs(1) - 1,
                                 jr == pl.num_programs(2) - 1))
        def _():
            out_ref[...] = jnp.sum(acc_ref[...]).reshape(1, 1, 1)

    last_rb = nb - 1

    def data_map(p, jc, jr):
        # Clamp so a (possible) trailing empty block on core 1 re-reads the
        # last valid block; its rows are rejected by the in-kernel row mask.
        return (jnp.minimum(p * jr_n + jr, last_rb), jc)

    lead_sem = pltpu.CORE_PARALLEL if cfg["core_parallel"] else pltpu.ARBITRARY
    comp_kwargs = dict(
        dimension_semantics=(lead_sem, pltpu.ARBITRARY, pltpu.ARBITRARY))
    if cfg["vmem_limit"] is not None:
        comp_kwargs["vmem_limit_bytes"] = cfg["vmem_limit"]

    cost = pl.CostEstimate(
        flops=10 * bc * hw,
        transcendentals=0,
        bytes_accessed=2 * bc * hw * itemsize + hw * 4 + ncores * 4)

    partials = pl.pallas_call(
        kernel,
        out_shape=jax.ShapeDtypeStruct((ncores, 1, 1), jnp.float32),
        grid_spec=pltpu.PrefetchScalarGridSpec(
            num_scalar_prefetch=0,
            grid=(ncores, jc_n, jr_n),
            in_specs=[
                pl.BlockSpec((tbc, lane_blk), data_map),
                pl.BlockSpec((tbc, lane_blk), data_map),
                # Mask block depends only on jc -> stays resident across jr.
                pl.BlockSpec((1, lane_blk), lambda p, jc, jr: (0, jc)),
            ],
            out_specs=pl.BlockSpec((1, 1, 1), lambda p, jc, jr: (p, 0, 0)),
            scratch_shapes=[pltpu.VMEM((chunk, lane_blk), jnp.float32)],
        ),
        compiler_params=pltpu.CompilerParams(**comp_kwargs),
        cost_estimate=cost,
    )(xr2, x2, mask2)

    return jnp.sum(partials)


# --------------------------------------------------------------------------
# Wrapper (forward-pass semantics of OceanVAELoss)
# --------------------------------------------------------------------------
@functools.partial(jax.jit, static_argnames=("kld_weight",))
def ocean_vae_loss(x_recon, x, mu, logvar, ocean_mask, kld_weight):
    """Returns (total_loss, recon_loss, kld_loss) as float32 scalars."""
    if x.ndim != 4 or x_recon.ndim != 4:
        raise ValueError(
            f"Format incorrect: x_recon={x_recon.shape}, x={x.shape}. "
            f"Attendu [B, C, H, W]")
    B, C, H, W = x.shape
    BC, HW = B * C, H * W

    # --- spatial mask handling (tiny, plain JAX) -----------------------------
    if ocean_mask is None:
        spatial_mask = jnp.ones((H, W), jnp.float32)   # F.mse_loss(mean) path
    else:
        om = ocean_mask
        if om.ndim == 2:
            spatial_mask = om.astype(jnp.float32)
        elif om.ndim == 3:
            spatial_mask = jnp.any(om.astype(bool), axis=0).astype(jnp.float32)
        elif om.ndim == 4:
            spatial_mask = jnp.any(om.astype(bool),
                                   axis=(0, 1)).astype(jnp.float32)
        else:
            raise ValueError(f"Format de masque invalide: {om.shape}")
        if spatial_mask.shape != (H, W):
            raise ValueError(
                f"Dimensions du masque ({spatial_mask.shape}) ne correspondent "
                f"pas aux données ({H}, {W})")

    # sum(new_mask) == B*C * sum(spatial_mask).
    ocean_points = jnp.float32(BC) * jnp.sum(spatial_mask)
    # TODO(synk): num_ocean_points == 0 early-return / warning path of the
    # PyTorch module is not replicated (host-side data-dependent control flow).

    # Zero-copy lane-dense views (contiguous reshapes, no padding copies).
    xr2 = x_recon.reshape(BC, HW)
    xx2 = x.reshape(BC, HW)
    mask2 = spatial_mask.reshape(1, HW)

    sse = _masked_sse(xr2, xx2, mask2, BC, HW, _chip_config())
    recon_loss = sse / ocean_points

    # --- KLD: tiny (B, L) elementwise + mean; plain JAX ----------------------
    lv = jnp.clip(logvar.astype(jnp.float32), -20.0, 20.0)
    mc = jnp.clip(mu.astype(jnp.float32), -10.0, 10.0)
    kld_loss = -0.5 * jnp.mean(1.0 + lv - mc * mc - jnp.exp(lv))

    total_loss = recon_loss + jnp.float32(kld_weight) * kld_loss
    return total_loss, recon_loss, kld_loss


# --------------------------------------------------------------------------
# Pure-JAX reference (mirrors the torch math) for sanity checking
# --------------------------------------------------------------------------
def ocean_vae_loss_ref(x_recon, x, mu, logvar, ocean_mask, kld_weight):
    B, C, H, W = x.shape
    mask = (jnp.ones((H, W), jnp.float32) if ocean_mask is None
            else ocean_mask.astype(jnp.float32))
    new_mask = jnp.broadcast_to(mask.reshape(1, 1, H, W), (B, C, H, W))
    x_c = jnp.where(jnp.isnan(x), 0.0, x)
    xr_c = jnp.where(jnp.isnan(x_recon), 0.0, x_recon)
    err = (xr_c * new_mask - x_c * new_mask) ** 2
    recon = jnp.sum(err) / jnp.sum(new_mask)
    lv = jnp.clip(logvar, -20.0, 20.0)
    m = jnp.clip(mu, -10.0, 10.0)
    kld = -0.5 * jnp.mean(1 + lv - m ** 2 - jnp.exp(lv))
    return recon + kld_weight * kld, recon, kld


# --------------------------------------------------------------------------
# Tests
# --------------------------------------------------------------------------
def _check(name, B, C, H, W, L, dtype, use_mask, seed, rtol, atol,
           kld_weight=0.1):
    ks = jax.random.split(jax.random.PRNGKey(seed), 5)
    x = jax.random.normal(ks[0], (B, C, H, W), jnp.float32)
    x_recon = jax.random.normal(ks[1], (B, C, H, W), jnp.float32)
    mu = jax.random.normal(ks[2], (B, L), jnp.float32)
    logvar = jax.random.normal(ks[3], (B, L), jnp.float32)
    mask = ((jax.random.uniform(ks[4], (H, W)) > 0.3).astype(jnp.float32)
            if use_mask else None)
    # Exercise the NaN-cleaning path.
    x = x.at[0, 0, 1, 2].set(jnp.nan)
    x_recon = x_recon.at[B - 1, C - 1, 3, 1].set(jnp.nan)
    x = x.astype(dtype)
    x_recon = x_recon.astype(dtype)

    out = ocean_vae_loss(x_recon, x, mu, logvar, mask, kld_weight)
    jax.block_until_ready(out)
    ref = ocean_vae_loss_ref(x_recon.astype(jnp.float32),
                             x.astype(jnp.float32), mu, logvar, mask,
                             kld_weight)
    for got, want in zip(out, ref):
        if not jnp.allclose(got, want, rtol=rtol, atol=atol):
            raise AssertionError(f"{name}: got {got}, want {want}")


if __name__ == "__main__":
    # Seeded via jax.random.PRNGKey(0) (+ distinct fold-in seeds per case).
    _check("masked_f32",      2, 4, 16, 16, 32, jnp.float32,  True,  0, 1e-5, 1e-5)
    _check("no_mask_f32",     2, 4, 16, 16, 32, jnp.float32,  False, 1, 1e-5, 1e-5)
    _check("ragged_rows_f32", 5, 4, 16, 16, 32, jnp.float32,  True,  2, 1e-5, 1e-5)
    _check("odd_hw_f32",      2, 4, 10, 13, 32, jnp.float32,  True,  3, 1e-5, 1e-5)
    _check("small_bc_f32",    1, 4, 16, 16, 32, jnp.float32,  True,  4, 1e-5, 1e-5)
    _check("masked_bf16",     2, 4, 16, 16, 32, jnp.bfloat16, True,  5, 2e-2, 1e-2)
    print("KERNEL_OK")
</pallas_src>

<mosaic_0001>
module attributes {stable_mosaic.version = 11 : i64} {
  func.func @kernel(%arg0: i32, %arg1: i32, %arg2: i32, %arg3: memref<8x256xf32, #tpu.memory_space<vmem>>, %arg4: memref<8x256xf32, #tpu.memory_space<vmem>>, %arg5: memref<1x256xf32, #tpu.memory_space<vmem>>, %arg6: memref<1x1x1xf32, #tpu.memory_space<vmem>>, %arg7: memref<8x256xf32, #tpu.memory_space<vmem>>) attributes {dimension_semantics = [#tpu.dimension_semantics<arbitrary>, #tpu.dimension_semantics<arbitrary>, #tpu.dimension_semantics<arbitrary>], iteration_bounds = array<i64: 1, 1, 1>, scalar_prefetch = 0 : i64, scratch_operands = 1 : i64, tpu.core_type = #tpu.core_type<tc>, window_params = [{transform_indices = @transform_0, window_bounds = array<i64: 8, 256>}, {transform_indices = @transform_1, window_bounds = array<i64: 8, 256>}, {transform_indices = @transform_2, window_bounds = array<i64: 1, 256>}, {transform_indices = @transform_3, window_bounds = array<i64: 1, 1, 1>}]} {
    %c0_i32 = arith.constant 0 : i32
    %0 = arith.cmpi eq, %arg1, %c0_i32 : i32
    %c0_i32_0 = arith.constant 0 : i32
    %1 = arith.cmpi eq, %arg2, %c0_i32_0 : i32
    %2 = arith.andi %0, %1 : i1
    %3 = arith.extui %2 : i1 to i32
    %c0_i32_1 = arith.constant 0 : i32
    %4 = arith.cmpi ne, %3, %c0_i32_1 : i32
    scf.if %4 {
      %cst_21 = arith.constant 0.000000e+00 : f32
      %53 = vector.broadcast %cst_21 : f32 to vector<8x256xf32>
      %c0_22 = arith.constant 0 : index
      %c0_23 = arith.constant 0 : index
      %54 = vector.load %arg7[%c0_22, %c0_23] : memref<8x256xf32, #tpu.memory_space<vmem>>, vector<8x256xf32>
      tpu.vector_store %arg7[%c0_22, %c0_23], %53 {strides = array<i32>} : memref<8x256xf32, #tpu.memory_space<vmem>>, vector<8x256xf32>,
    } else {
    }
    %c256_i32 = arith.constant 256 : i32
    %5 = arith.muli %arg1, %c256_i32 : i32
    %6 = tpu.iota {dimensions = array<i32: 1>} : vector<1x256xi32>
    %7 = vector.broadcast %5 : i32 to vector<1x256xi32>
    %8 = arith.addi %7, %6 : vector<1x256xi32>
    %c256_i32_2 = arith.constant 256 : i32
    %9 = vector.broadcast %c256_i32_2 : i32 to vector<1x256xi32>
    %10 = arith.cmpi slt, %8, %9 : vector<1x256xi32>
    %c0 = arith.constant 0 : index
    %c0_3 = arith.constant 0 : index
    %11 = vector.load %arg5[%c0, %c0_3] : memref<1x256xf32, #tpu.memory_space<vmem>>, vector<1x256xf32>
    %cst = arith.constant 0.000000e+00 : f32
    %12 = vector.broadcast %cst : f32 to vector<1x256xf32>
    %13 = arith.select %10, %11, %12 : vector<1x256xi1>, vector<1x256xf32>
    %c1_i32 = arith.constant 1 : i32
    %14 = arith.muli %arg0, %c1_i32 : i32
    %15 = arith.addi %14, %arg2 : i32
    %c8_i32 = arith.constant 8 : i32
    %16 = arith.muli %15, %c8_i32 : i32
    %c0_i32_4 = arith.constant 0 : i32
    %c8_i32_5 = arith.constant 8 : i32
    %17 = arith.muli %c0_i32_4, %c8_i32_5 : i32
    %18 = tpu.assume_multiple %17, 8 : i32
    %19 = arith.index_cast %18 : i32 to index
    %c0_6 = arith.constant 0 : index
    %20 = vector.load %arg3[%19, %c0_6] : memref<8x256xf32, #tpu.memory_space<vmem>>, vector<8x256xf32>
    %21 = arith.index_cast %18 : i32 to index
    %c0_7 = arith.constant 0 : index
    %22 = vector.load %arg4[%21, %c0_7] : memref<8x256xf32, #tpu.memory_space<vmem>>, vector<8x256xf32>
    %23 = arith.cmpf one, %20, %20 : vector<8x256xf32>
    %cst_8 = arith.constant 0.000000e+00 : f32
    %24 = vector.broadcast %cst_8 : f32 to vector<8x256xf32>
    %25 = arith.select %23, %24, %20 : vector<8x256xi1>, vector<8x256xf32>
    %26 = arith.cmpf one, %22, %22 : vector<8x256xf32>
    %cst_9 = arith.constant 0.000000e+00 : f32
    %27 = vector.broadcast %cst_9 : f32 to vector<8x256xf32>
    %28 = arith.select %26, %27, %22 : vector<8x256xi1>, vector<8x256xf32>
    %29 = arith.subf %25, %28 : vector<8x256xf32>
    %30 = vector.broadcast %13 : vector<1x256xf32> to vector<8x256xf32>
    %31 = arith.mulf %29, %30 : vector<8x256xf32>
    %32 = arith.mulf %31, %31 : vector<8x256xf32>
    %c8_i32_10 = arith.constant 8 : i32
    %33 = arith.muli %c0_i32_4, %c8_i32_10 : i32
    %34 = arith.addi %16, %33 : i32
    %35 = tpu.iota {dimensions = array<i32: 0>} : vector<8x1xi32>
    %36 = vector.broadcast %34 : i32 to vector<8x1xi32>
    %37 = arith.addi %36, %35 : vector<8x1xi32>
    %c8_i32_11 = arith.constant 8 : i32
    %38 = vector.broadcast %c8_i32_11 : i32 to vector<8x1xi32>
    %39 = arith.cmpi slt, %37, %38 : vector<8x1xi32>
    %40 = vector.broadcast %39 : vector<8x1xi1> to vector<8x256xi1>
    %41 = vector.broadcast %10 : vector<1x256xi1> to vector<8x256xi1>
    %42 = arith.andi %40, %41 : vector<8x256xi1>
    %c0_12 = arith.constant 0 : index
    %c0_13 = arith.constant 0 : index
    %43 = vector.load %arg7[%c0_12, %c0_13] : memref<8x256xf32, #tpu.memory_space<vmem>>, vector<8x256xf32>
    %cst_14 = arith.constant 0.000000e+00 : f32
    %44 = vector.broadcast %cst_14 : f32 to vector<8x256xf32>
    %45 = arith.select %42, %32, %44 : vector<8x256xi1>, vector<8x256xf32>
    %46 = arith.addf %43, %45 : vector<8x256xf32>
    %c0_15 = arith.constant 0 : index
    %c0_16 = arith.constant 0 : index
    %47 = vector.load %arg7[%c0_15, %c0_16] : memref<8x256xf32, #tpu.memory_space<vmem>>, vector<8x256xf32>
    tpu.vector_store %arg7[%c0_15, %c0_16], %46 {strides = array<i32>} : memref<8x256xf32, #tpu.memory_space<vmem>>, vector<8x256xf32>,
    %c1_i32_17 = arith.constant 1 : i32
    %c0_i32_18 = arith.constant 0 : i32
    %48 = arith.cmpi eq, %arg1, %c0_i32_18 : i32
    %c0_i32_19 = arith.constant 0 : i32
    %49 = arith.cmpi eq, %arg2, %c0_i32_19 : i32
    %50 = arith.andi %48, %49 : i1
    %51 = arith.extui %50 : i1 to i32
    %c0_i32_20 = arith.constant 0 : i32
    %52 = arith.cmpi ne, %51, %c0_i32_20 : i32
    scf.if %52 {
      %c0_21 = arith.constant 0 : index
      %c0_22 = arith.constant 0 : index
      %53 = vector.load %arg7[%c0_21, %c0_22] : memref<8x256xf32, #tpu.memory_space<vmem>>, vector<8x256xf32>
      %54 = vector.shape_cast %53 : vector<8x256xf32> to vector<1x8x256xf32>
      %cst_23 = arith.constant dense<0.000000e+00> : vector<1xf32>
      %55 = vector.multi_reduction <add>, %54, %cst_23 [1, 2] : vector<1x8x256xf32> to vector<1xf32>
      %56 = vector.shape_cast %55 : vector<1xf32> to vector<1x1x1xf32>
      %57 = vector.extract %56[0, 0, 0] : f32 from vector<1x1x1xf32>
      %58 = vector.broadcast %57 : f32 to vector<1x1x1xf32>
      %c0_24 = arith.constant 0 : index
      %c0_25 = arith.constant 0 : index
      %c0_26 = arith.constant 0 : index
      %59 = vector.load %arg6[%c0_24, %c0_25, %c0_26] : memref<1x1x1xf32, #tpu.memory_space<vmem>>, vector<1x1x1xf32>
      tpu.vector_store %arg6[%c0_24, %c0_25, %c0_26], %58 {strides = array<i32>} : memref<1x1x1xf32, #tpu.memory_space<vmem>>, vector<1x1x1xf32>,
    } else {
    }
    return
  }
  func.func @transform_0(%arg0: i32, %arg1: i32, %arg2: i32) -> (i32, i32) {
    %c1_i32 = arith.constant 1 : i32
    %0 = arith.muli %arg0, %c1_i32 : i32
    %1 = arith.addi %0, %arg2 : i32
    %c0_i32 = arith.constant 0 : i32
    %2 = arith.minsi %1, %c0_i32 : i32
    %c0_i32_0 = arith.constant 0 : i32
    return %2, %arg1 : i32, i32
  }
  func.func @transform_1(%arg0: i32, %arg1: i32, %arg2: i32) -> (i32, i32) {
    %c1_i32 = arith.constant 1 : i32
    %0 = arith.muli %arg0, %c1_i32 : i32
    %1 = arith.addi %0, %arg2 : i32
    %c0_i32 = arith.constant 0 : i32
    %2 = arith.minsi %1, %c0_i32 : i32
    %c0_i32_0 = arith.constant 0 : i32
    return %2, %arg1 : i32, i32
  }
  func.func @transform_2(%arg0: i32, %arg1: i32, %arg2: i32) -> (i32, i32) {
    %c0_i32 = arith.constant 0 : i32
    %c0_i32_0 = arith.constant 0 : i32
    return %c0_i32, %arg1 : i32, i32
  }
  func.func @transform_3(%arg0: i32, %arg1: i32, %arg2: i32) -> (i32, i32, i32) {
    %c0_i32 = arith.constant 0 : i32
    %c0_i32_0 = arith.constant 0 : i32
    %c0_i32_1 = arith.constant 0 : i32
    return %arg0, %c0_i32, %c0_i32_0 : i32, i32, i32
  }
}

</mosaic_0001>

<llo_original>
// kernel: ocean_vae_loss.1
$region0: #{ocean_vae_loss.1}
  #allocation0 [shape = 'u32[]', space=smem, size = 0x4, offset = 0x4, fixed_abs, tag = 'smem constant byte address 0x4 - core index']
  #allocation1 [shape = 'u32[144,128]{1,0:T(1,128)}', space=vmem, size = 0x12000, scoped, tag = 'internal scratch']
  #allocation2 [shape = 'f32[8,256]{1,0:T(8,128)}', space=vmem, size = 0x2000, scoped, tag = 'scratch operand']
  %s0 = inlined_call_operand.vmem [shape: f32[8,256], index: 0, kind: input, shape index: {}]
  %s1 = inlined_call_operand.vmem [shape: f32[8,256], index: 1, kind: input, shape index: {}]
  %s2 = inlined_call_operand.vmem [shape: f32[1,256], index: 2, kind: input, shape index: {}]
  %s3 = inlined_call_operand.hbm [shape: f32[1,1,1], index: 3, kind: output, shape index: {}]
  %s4 = sld [smem:[#allocation0]]
  $region30: #{ocean_vae_loss.1} parent=0
    _
  %s6 = ssub.s32 1, %s4
  %s7 = scalar_select 0, %s6, %s4
  $region1: #{ocean_vae_loss.1} parent=0
    #allocation3 [shape = 'u8[512]{0}', space=vmem, size = 0x400, scoped, tag = 'output window, operand 0, single buffered']
    #allocation4 [shape = 's32[1]{0}', space=sflag, size = 0x4, scoped, tag = 'scoped memory for ocean_vae_loss.1']
    %8 = vsyncpa [#allocation4], 0
    // Predicated region
    $region2: #{ocean_vae_loss.1} parent=1 // pred_check
      _
    $region3: #{ocean_vae_loss.1} parent=1 // pred_check_branch
      %10 = sbr.rel (0) target = $region5
    $region4: #{ocean_vae_loss.1} parent=1 // pred_region
      %s11 = sadd.s32 0, 0
      %p12 = scmp.lt.s32.totalorder %s11, 0
      %s13 = scalar_select %p12, %s11, 0
      %p14 = scmp.lt.s32.totalorder %s13, 0
      %s15 = scalar_select %p14, %s13, 0
      %s16 = smul.addr %s15, 2
      %s17 = smul.addr %s16, 8
      %s18 = scalar_lea.vmem %s0, %s17
      %s19 = sadd.s32 0, 0
      %p20 = scmp.lt.s32.totalorder %s19, 0
      %s21 = scalar_select %p20, %s19, 0
    $region5: #{ocean_vae_loss.1} parent=1 // pred_fallthru
      _
    // Predicated region
    $region6: #{ocean_vae_loss.1} parent=1 // pred_check
      _
    $region7: #{ocean_vae_loss.1} parent=1 // pred_check_branch
      %23 = sbr.rel (0) target = $region9
    $region8: #{ocean_vae_loss.1} parent=1 // pred_region
      %s24 = sadd.s32 0, 0
      %p25 = scmp.lt.s32.totalorder %s24, 0
      %s26 = scalar_select %p25, %s24, 0
      %p27 = scmp.lt.s32.totalorder %s26, 0
      %s28 = scalar_select %p27, %s26, 0
      %s29 = smul.addr %s28, 2
      %s30 = smul.addr %s29, 8
      %s31 = scalar_lea.vmem %s1, %s30
      %s32 = sadd.s32 0, 0
      %p33 = scmp.lt.s32.totalorder %s32, 0
      %s34 = scalar_select %p33, %s32, 0
    $region9: #{ocean_vae_loss.1} parent=1 // pred_fallthru
      _
    // Predicated region
    $region10: #{ocean_vae_loss.1} parent=1 // pred_check
      _
    $region11: #{ocean_vae_loss.1} parent=1 // pred_check_branch
      %36 = sbr.rel (0) target = $region13
    $region12: #{ocean_vae_loss.1} parent=1 // pred_region
      _
    $region13: #{ocean_vae_loss.1} parent=1 // pred_fallthru
      _
    %s37 = sadd.s32 0, 0
    %p38 = scmp.lt.s32.totalorder %s37, 0
    %s39 = scalar_select %p38, %s37, 0
    %p40 = scmp.lt.s32.totalorder %s39, 0
    %s41 = scalar_select %p40, %s39, 0
    %s42 = smul.addr %s41, 2
    %s43 = smul.addr %s42, 8
    %s44 = scalar_lea.vmem %s0, %s43
    %s45 = sadd.s32 0, 0
    %p46 = scmp.lt.s32.totalorder %s45, 0
    %s47 = scalar_select %p46, %s45, 0
    %p48 = scmp.lt.s32.totalorder %s47, 0
    %s49 = scalar_select %p48, %s47, 0
    %s50 = smul.addr %s49, 2
    %s51 = smul.addr %s50, 8
    %s52 = scalar_lea.vmem %s1, %s51
    %s53 = sadd.s32 0, 0
    %p54 = scmp.lt.s32.totalorder %s53, 0
    %s55 = scalar_select %p54, %s53, 0
    %p56 = scmp.lt.s32.totalorder %s55, 0
    %s57 = scalar_select %p56, %s55, 0
    %s58 = smul.addr %s57, 2
    %s59 = smul.addr %s58, 8
    %s60 = scalar_lea.vmem %s0, %s59
    %s61 = sadd.s32 0, 0
    %p62 = scmp.lt.s32.totalorder %s61, 0
    %s63 = scalar_select %p62, %s61, 0
    %s64 = sadd.s32 0, 0
    %p65 = scmp.lt.s32.totalorder %s64, 0
    %s66 = scalar_select %p65, %s64, 0
    %p67 = scmp.lt.s32.totalorder %s66, 0
    %s68 = scalar_select %p67, %s66, 0
    %s69 = smul.addr %s68, 2
    %s70 = smul.addr %s69, 8
    %s71 = scalar_lea.vmem %s1, %s70
    %s72 = sadd.s32 0, 0
    %p73 = scmp.lt.s32.totalorder %s72, 0
    %s74 = scalar_select %p73, %s72, 0
    %p75 = scmp.eq.s32.totalorder 0, 0
    %p76 = scmp.eq.s32.totalorder 0, 0
    %p77 = pnand %p75, %p76
    %p78 = pneg %p77
    // Predicated region
    $region14: #{ocean_vae_loss.1} parent=1 // pred_check
      _
    $region15: #{ocean_vae_loss.1} parent=1 // pred_check_branch
      %80 = sbr.rel (%p77) target = $region17
    $region16: #{ocean_vae_loss.1} parent=1 // pred_region
      %81 = vst [vmem:[#allocation2] sm:$0xff] 0.0
      %82 = vst [vmem:[#allocation2 + $0x8] sm:$0xff] 0.0
    $region17: #{ocean_vae_loss.1} parent=1 // pred_fallthru
      _
    %s83 = smul.u32 0, 256
    %v84 = vlaneseq
    %v85 = vand.u32 %v84, 127
    %v86 = vadd.s32 %v85, 128
    %v87 = vstv %s83
    %v88 = vadd.s32 %v87, %v85
    %v89 = vadd.s32 %v87, %v86
    %vm90 = vcmp.lt.s32.totalorder %v88, 256
    %vm91 = vcmp.lt.s32.totalorder %v89, 256
    %v92 = vld [vmem:[%s2] sm:$0x3]
    %v94 = vlaneseq
    %v95 = vshrl.u32 %v94, 7
    %v96 = vsub.s32 0, %v95
    %v97 = vrot.slane %v92, %v96
    %v98 = vlaneseq
    %v99 = vshrl.u32 %v98, 7
    %v100 = vsub.s32 1, %v99
    %v101 = vrot.slane %v92, %v100
    %v104 = vsel %vm90, %v97, 0.0
    %v105 = vsel %vm91, %v101, 0.0
    %s106 = sadd.s32 0, 0
    %s107 = smul.u32 %s106, 8
    %s108 = smul.u32 0, 2
    %s109 = smul.addr %s108, 8
    %s110 = scalar_lea.vmem %s60, %s109
    %v111 = vld [vmem:[%s110] sm:$0xff]
    %v112 = vld [vmem:[%s110 + $0x8] sm:$0xff]
    %s113 = smul.addr %s108, 8
    %s114 = scalar_lea.vmem %s71, %s113
    %v115 = vld [vmem:[%s114] sm:$0xff]
    %v116 = vld [vmem:[%s114 + $0x8] sm:$0xff]
    %vm117 = vcmp.ne.f32.partialorder %v111, %v111
    %vm118 = vcmp.ne.f32.partialorder %v112, %v112
    %v119 = vsel %vm117, 0.0, %v111
    %v120 = vsel %vm118, 0.0, %v112
    %vm121 = vcmp.ne.f32.partialorder %v115, %v115
    %vm122 = vcmp.ne.f32.partialorder %v116, %v116
    %v123 = vsel %vm121, 0.0, %v115
    %v124 = vsel %vm122, 0.0, %v116
    %v125 = vsub.f32 %v119, %v123
    %v126 = vsub.f32 %v120, %v124
    %v127 = vlaneseq
    %v128 = vshrl.u32 %v127, 7
    %v129 = vsub.s32 0, %v128
    %v130 = vrot.slane %v104, %v129
    %v131 = vlaneseq
    %v132 = vshrl.u32 %v131, 7
    %v133 = vsub.s32 0, %v132
    %v134 = vrot.slane %v105, %v133
    %v135 = vmul.f32 %v125, %v130
    %v136 = vmul.f32 %v126, %v134
    %v137 = vmul.f32 %v135, %v135
    %v138 = vmul.f32 %v136, %v136
    %v139 = vlaneseq
    %v140 = vshrl.u32 %v139, 7
    %v141 = vstv %s107
    %v142 = vadd.s32 %v141, %v140
    %vm143 = vcmp.lt.s32.totalorder %v142, 8
    %v144 = vsel %vm143, 1, 0
    %vm145 = vcmp.eq.s32.totalorder %v144, 1
    %v146 = vsel %vm90, 1, 0
    %v147 = vsel %vm91, 1, 0
    %vm148 = vcmp.eq.s32.totalorder %v146, 1
    %vm149 = vcmp.eq.s32.totalorder %v147, 1
    %vm150 = vmand %vm145, %vm148
    %vm151 = vmand %vm145, %vm149
    %v152 = vld [vmem:[#allocation2] sm:$0xff]
    %v153 = vld [vmem:[#allocation2 + $0x8] sm:$0xff]
    %v154 = vsel %vm150, %v137, 0.0
    %v155 = vsel %vm151, %v138, 0.0
    %v156 = vadd.f32 %v152, %v154
    %v157 = vadd.f32 %v153, %v155
    %158 = vst [vmem:[#allocation2] sm:$0xff] %v156
    %159 = vst [vmem:[#allocation2 + $0x8] sm:$0xff] %v157
    // Predicated region
    $region18: #{ocean_vae_loss.1} parent=1 // pred_check
      _
    $region19: #{ocean_vae_loss.1} parent=1 // pred_check_branch
      %161 = sbr.rel (%p77) target = $region21
    $region20: #{ocean_vae_loss.1} parent=1 // pred_region
      %v162 = vld [vmem:[#allocation2] sm:$0xff]
      %v163 = vld [vmem:[#allocation2 + $0x8] sm:$0xff]
      %v164 = vadd.f32 %v162, %v163
      %165 = vadd.xlane.f32.xlu0 %v164
      %v166 = vpop.xlane.xlu0 %165
      %v167 = vrot.slane %v166, 4
      %v168 = vadd.f32 %v166, %v167
      %v169 = vrot.slane %v168, 2
      %v170 = vadd.f32 %v168, %v169
      %v171 = vrot.slane %v170, 1
      %v172 = vadd.f32 %v170, %v171
      %s173 = vtos %v172
      %v174 = vstv %s173
      %vm175 = vcmask 0
      %176 = vst.msk [vmem:[#allocation3] sm:$0x1] %vm175, %v174
    $region21: #{ocean_vae_loss.1} parent=1 // pred_fallthru
      _
    // Predicated region
    $region22: #{ocean_vae_loss.1} parent=1 // pred_check
      _
    $region23: #{ocean_vae_loss.1} parent=1 // pred_check_branch
      %178 = sbr.rel (0) target = $region25
    $region24: #{ocean_vae_loss.1} parent=1 // pred_region
      %s180 = ssub.s32 16, 16
      %181 = vsyncadd [#allocation4], %s180
      %s183 = sshll.u32 [#allocation3], 4
      %s184 = int_to_ptr.vmem [resolvable:$true] %s183
      %186 = dma.vmem_to_hbm [thread:$0]  %s184, 16, %s3, [#allocation4]
    $region25: #{ocean_vae_loss.1} parent=1 // pred_fallthru
      _
    // Predicated region
    $region26: #{ocean_vae_loss.1} parent=1 // pred_check
      _
    $region27: #{ocean_vae_loss.1} parent=1 // pred_check_branch
      %188 = sbr.rel (0) target = $region29
    $region28: #{ocean_vae_loss.1} parent=1 // pred_region
      %189 = dma.done [#allocation4], 16
    $region29: #{ocean_vae_loss.1} parent=1 // pred_fallthru
      _
    %190 = vsyncpa [#allocation4], 1

</llo_original>
